<compile_context>
chip_gen: v6e
topology: v6e:2x2x1
jax: 0.10.0
libtpu: 0.0.40
codegen_flags: <defaults>
</compile_context>

<pallas_src>
import math

import jax
import jax.numpy as jnp
import numpy as np
from jax.experimental import pallas as pl
from jax.experimental.pallas import tpu as pltpu

BN_EPS = 1e-5  # PyTorch BatchNorm1d default


def _circular_conv(x, w):
    """Circular Conv1d, k=3, no bias.

    x: [Bt, L, C] float32 (one batch tile, L on sublanes, C on lanes)
    w: [3, C_in, C_out]  (w[k, ci, co] = w_torch[co, ci, k]), possibly bf16
    returns y: [Bt, L, C] float32
    """
    Bt, L, C = x.shape
    mdt = w.dtype  # MXU input dtype (f32 or bf16); accumulation stays f32.

    # Circular shifts along L (static shifts -> cheap slice+concat on sublanes).
    x_m1 = jnp.roll(x, 1, axis=1)    # x[l-1 mod L]
    x_p1 = jnp.roll(x, -1, axis=1)   # x[l+1 mod L]

    def flat(a):
        return a.reshape(Bt * L, C).astype(mdt)

    if C % 128 == 0:
        # Lane-aligned concat -> one fused MXU dot with K = 3C.
        xs = jnp.concatenate([flat(x_m1), flat(x), flat(x_p1)], axis=1)  # [Bt*L, 3C]
        y = jnp.dot(xs, w.reshape(3 * C, C), preferred_element_type=jnp.float32)
    else:
        # Three accumulating dots: avoids lane-realignment copies from a
        # non-128-multiple concat and keeps peak VMEM lower.
        y = jnp.dot(flat(x_m1), w[0], preferred_element_type=jnp.float32)
        y = y + jnp.dot(flat(x), w[1], preferred_element_type=jnp.float32)
        y = y + jnp.dot(flat(x_p1), w[2], preferred_element_type=jnp.float32)
    return y.reshape(Bt, L, C)


def conv_stats_kernel(x_ref, w_ref, stats_ref):
    """Pass 1: conv recompute + per-block BN statistics (no y written to HBM).

    x_ref:     [Bt, L, C]
    w_ref:     [3, C, C]
    stats_ref: [1, 2, C]  row 0 = block sum, row 1 = block M2 (sum of squared
                          deviations from the *block* mean) — combined exactly
                          across blocks in the wrapper.
    """
    Bt, L, C = x_ref.shape
    y = _circular_conv(x_ref[...], w_ref[...])          # [Bt, L, C] f32
    yf = y.reshape(Bt * L, C)

    bsum = jnp.sum(yf, axis=0, keepdims=True)           # [1, C]
    bmean = bsum * (1.0 / (Bt * L))
    m2 = jnp.sum((yf - bmean) ** 2, axis=0, keepdims=True)  # [1, C]
    stats_ref[0] = jnp.concatenate([bsum, m2], axis=0)   # [2, C]


def conv_bn_elu_pool_kernel(x_ref, w_ref, scale_ref, shift_ref, o_ref, pad_ref):
    """Pass 2: conv recompute + folded BN FMA + ELU + MaxPool1d(k=3, s=2, p=1).

    x_ref:     [Bt, L, C]
    w_ref:     [3, C, C]
    scale_ref: [1, C]   gamma * rsqrt(var + eps)
    shift_ref: [1, C]   beta - mean * scale
    o_ref:     [Bt, L_out, C]  pooled output (stride-2 subsample fused here)
    pad_ref:   [Bt, L+2, C]    VMEM scratch: ELU output with -inf boundary rows
    """
    Bt, L, C = x_ref.shape
    L_out = o_ref.shape[1]

    y = _circular_conv(x_ref[...], w_ref[...])           # [Bt, L, C] f32

    # BatchNorm folded to a single FMA per element.
    scale = scale_ref[...].reshape(1, 1, C)
    shift = shift_ref[...].reshape(1, 1, C)
    yn = y * scale + shift

    # ELU (alpha = 1); exp only on the non-positive branch.
    ya = jnp.where(yn > 0, yn, jnp.exp(jnp.minimum(yn, 0.0)) - 1.0)

    # MaxPool1d(k=3, stride=2, pad=1): pad with -inf rows at both ends, park in
    # VMEM scratch, then take stride-2 sublane reads of the three window taps.
    ninf = jnp.full((Bt, 1, C), -jnp.inf, jnp.float32)
    pad_ref[...] = jnp.concatenate([ninf, ya, ninf], axis=1)   # [Bt, L+2, C]

    left = pad_ref[:, pl.ds(0, L_out, 2), :]    # ya[2j-1]  (-inf at j=0)
    mid = pad_ref[:, pl.ds(1, L_out, 2), :]     # ya[2j]
    right = pad_ref[:, pl.ds(2, L_out, 2), :]   # ya[2j+1]  (-inf past the end)
    o_ref[...] = jnp.maximum(mid, jnp.maximum(left, right)).astype(o_ref.dtype)


def _pick_batch_tile(B, L, C, target_bytes=1 << 20):
    """Largest divisor of B whose [Bt, L, C] f32 block is ~<= target_bytes,
    keeping at least 2 grid steps (megacore / v7x two-TC sharding)."""
    per_elem = L * C * 4
    cap = max(1, target_bytes // per_elem)
    if B >= 2:
        cap = min(cap, B // 2)
    bt = 1
    for d in range(1, B + 1):
        if B % d == 0 and d <= cap:
            bt = d
    return bt


def conv_layer_forward(x, w, b, gamma, beta, *, mxu_dtype=jnp.float32, out_dtype=None):
    """x: [B, L, C] float32 (same layout the PyTorch module receives).

    w: [C_out, C_in, 3] (PyTorch Conv1d layout). `b` is accepted for API parity
    but is mathematically cancelled by train-mode BN mean subtraction, so it is
    never sent to the device kernels.

    mxu_dtype: set jnp.bfloat16 on v6e/v7x for ~3x MXU throughput (accumulation
    stays f32); expect ~1e-2-level differences vs the f32 reference.
    out_dtype: pooled-output dtype (e.g. jnp.bfloat16 to halve store traffic).
    """
    del b  # TODO(synk): reinstate if eval-mode BN / running stats are needed.
    B, L, C = x.shape
    L_out = (L + 2 * 1 - 3) // 2 + 1          # MaxPool1d(k=3, s=2, p=1), floor mode
    out_dtype = x.dtype if out_dtype is None else out_dtype

    Bt = _pick_batch_tile(B, L, C)
    G = B // Bt

    # Fused tap tensor: wt[k, ci, co] = w_torch[co, ci, k]; cast in the wrapper
    # so bf16 MXU mode also halves the weight DMA.
    wt = jnp.transpose(w, (2, 1, 0)).astype(mxu_dtype)   # [3, C_in, C_out]

    x_block_bytes = Bt * L * C * x.dtype.itemsize
    vmem_limit = int(min(64 * 2 ** 20, max(16 * 2 ** 20, 16 * x_block_bytes)))
    cparams = pltpu.CompilerParams(
        dimension_semantics=("parallel",), vmem_limit_bytes=vmem_limit)

    # ---- Pass 1: per-block BN statistics only (no full-size y to HBM) ----
    stats = pl.pallas_call(
        conv_stats_kernel,
        out_shape=jax.ShapeDtypeStruct((G, 2, C), jnp.float32),
        grid=(G,),
        in_specs=[
            pl.BlockSpec((Bt, L, C), lambda g: (g, 0, 0)),    # x batch tile
            pl.BlockSpec((3, C, C), lambda g: (0, 0, 0)),     # conv taps (constant)
        ],
        out_specs=pl.BlockSpec((1, 2, C), lambda g: (g, 0, 0)),
        compiler_params=cparams,
    )(x, wt)

    # ---- Combine block statistics (exact pooled mean/variance) & fold BN ----
    n_b = jnp.float32(Bt * L)
    N = jnp.float32(B * L)
    bsum = stats[:, 0, :]                      # [G, C]
    bm2 = stats[:, 1, :]                       # [G, C]
    mean = jnp.sum(bsum, axis=0) / N
    bmean = bsum / n_b
    m2 = jnp.sum(bm2, axis=0) + jnp.sum(n_b * (bmean - mean[None, :]) ** 2, axis=0)
    var = jnp.maximum(m2 / N, 0.0)             # biased variance (PyTorch BN normalization)
    scale1 = gamma / jnp.sqrt(var + BN_EPS)
    shift1 = beta - mean * scale1
    scale = scale1.reshape(1, C).astype(jnp.float32)
    shift = shift1.reshape(1, C).astype(jnp.float32)

    # ---- Pass 2: fused conv recompute + BN FMA + ELU + pool (stride-2 inside) ----
    out = pl.pallas_call(
        conv_bn_elu_pool_kernel,
        out_shape=jax.ShapeDtypeStruct((B, L_out, C), out_dtype),
        grid=(G,),
        in_specs=[
            pl.BlockSpec((Bt, L, C), lambda g: (g, 0, 0)),    # x batch tile (re-read)
            pl.BlockSpec((3, C, C), lambda g: (0, 0, 0)),     # conv taps
            pl.BlockSpec((1, C), lambda g: (0, 0)),           # BN scale
            pl.BlockSpec((1, C), lambda g: (0, 0)),           # BN shift
        ],
        out_specs=pl.BlockSpec((Bt, L_out, C), lambda g: (g, 0, 0)),
        scratch_shapes=[pltpu.VMEM((Bt, L + 2, C), jnp.float32)],
        compiler_params=cparams,
    )(x, wt, scale, shift)
    return out


def conv_layer_reference(x, w, b, gamma, beta):
    """Pure-JAX reference mirroring the PyTorch forward (train-mode BN)."""
    B, L, C = x.shape
    L_out = (L + 2 - 3) // 2 + 1
    x_ncl = jnp.transpose(x, (0, 2, 1))
    x_pad = jnp.concatenate([x_ncl[:, :, -1:], x_ncl, x_ncl[:, :, :1]], axis=-1)
    y = sum(jnp.einsum("oc,bcl->bol", w[:, :, k], x_pad[:, :, k:k + L]) for k in range(3))
    y = y + b[None, :, None]
    mean = y.mean(axis=(0, 2), keepdims=True)
    var = ((y - mean) ** 2).mean(axis=(0, 2), keepdims=True)
    yn = (y - mean) / jnp.sqrt(var + BN_EPS) * gamma[None, :, None] + beta[None, :, None]
    ya = jnp.where(yn > 0, yn, jnp.exp(yn) - 1.0)
    y_pool_pad = jnp.pad(ya, ((0, 0), (0, 0), (1, 1)), constant_values=-jnp.inf)
    windows = jnp.stack([y_pool_pad[:, :, k::2][:, :, :L_out] for k in range(3)], axis=-1)
    pooled = jnp.max(windows, axis=-1)
    return jnp.transpose(pooled, (0, 2, 1))


if __name__ == "__main__":
    B, L, C = 2, 16, 8  # batch, seq_len, c_in

    key = jax.random.PRNGKey(0)
    k_x, k_w, k_b = jax.random.split(key, 3)

    x = jax.random.normal(k_x, (B, L, C), dtype=jnp.float32)

    # Deterministic Conv1d-style init (kaiming-uniform-like bounds); BN at defaults.
    fan_in = C * 3
    bound = 1.0 / math.sqrt(fan_in)
    w = jax.random.uniform(k_w, (C, C, 3), minval=-bound, maxval=bound, dtype=jnp.float32)
    b = jax.random.uniform(k_b, (C,), minval=-bound, maxval=bound, dtype=jnp.float32)
    gamma = jnp.ones((C,), dtype=jnp.float32)
    beta = jnp.zeros((C,), dtype=jnp.float32)

    L_out = (L + 2 - 3) // 2 + 1
    ref = jax.block_until_ready(conv_layer_reference(x, w, b, gamma, beta))

    # f32 MXU path (exactness check).
    out = jax.block_until_ready(conv_layer_forward(x, w, b, gamma, beta))
    assert out.shape == (B, L_out, C), out.shape
    np.testing.assert_allclose(np.asarray(out), np.asarray(ref), rtol=1e-5, atol=1e-5)

    # bf16 MXU path (v6e/v7x perf mode) — looser tolerance per the review note.
    out_bf16 = jax.block_until_ready(
        conv_layer_forward(x, w, b, gamma, beta, mxu_dtype=jnp.bfloat16))
    np.testing.assert_allclose(np.asarray(out_bf16), np.asarray(ref), rtol=5e-2, atol=5e-2)

    print("KERNEL_OK")
</pallas_src>

<mosaic_0001>
module attributes {stable_mosaic.version = 11 : i64} {
  func.func @conv_stats_kernel(%arg0: i32, %arg1: memref<1x16x8xf32, #tpu.memory_space<vmem>>, %arg2: memref<3x8x8xf32, #tpu.memory_space<vmem>>, %arg3: memref<1x2x8xf32, #tpu.memory_space<vmem>>) attributes {dimension_semantics = [#tpu.dimension_semantics<parallel>], iteration_bounds = array<i64: 2>, scalar_prefetch = 0 : i64, scratch_operands = 0 : i64, tpu.core_type = #tpu.core_type<tc>, window_params = [{transform_indices = @transform_0, window_bounds = array<i64: 1, 16, 8>}, {pipeline_mode = #tpu.pipeline_mode<synchronous>, transform_indices = @transform_1, window_bounds = array<i64: 3, 8, 8>}, {transform_indices = @transform_2, window_bounds = array<i64: 1, 2, 8>}]} {
    %c0 = arith.constant 0 : index
    %c0_0 = arith.constant 0 : index
    %c0_1 = arith.constant 0 : index
    %0 = vector.load %arg1[%c0, %c0_0, %c0_1] : memref<1x16x8xf32, #tpu.memory_space<vmem>>, vector<1x16x8xf32>
    %c0_2 = arith.constant 0 : index
    %c0_3 = arith.constant 0 : index
    %c0_4 = arith.constant 0 : index
    %1 = vector.load %arg2[%c0_2, %c0_3, %c0_4] : memref<3x8x8xf32, #tpu.memory_space<vmem>>, vector<3x8x8xf32>
    %2 = vector.extract_strided_slice %0 {offsets = [0, 15, 0], sizes = [1, 1, 8], strides = [1, 1, 1]} : vector<1x16x8xf32> to vector<1x1x8xf32>
    %3 = vector.extract_strided_slice %0 {offsets = [0, 0, 0], sizes = [1, 15, 8], strides = [1, 1, 1]} : vector<1x16x8xf32> to vector<1x15x8xf32>
    %4 = tpu.concatenate %2, %3 in 1 : vector<1x1x8xf32>, vector<1x15x8xf32> -> vector<1x16x8xf32>
    %5 = vector.extract_strided_slice %0 {offsets = [0, 1, 0], sizes = [1, 15, 8], strides = [1, 1, 1]} : vector<1x16x8xf32> to vector<1x15x8xf32>
    %6 = vector.extract_strided_slice %0 {offsets = [0, 0, 0], sizes = [1, 1, 8], strides = [1, 1, 1]} : vector<1x16x8xf32> to vector<1x1x8xf32>
    %7 = tpu.concatenate %5, %6 in 1 : vector<1x15x8xf32>, vector<1x1x8xf32> -> vector<1x16x8xf32>
    %8 = vector.shape_cast %4 : vector<1x16x8xf32> to vector<16x8xf32>
    %9 = vector.extract_strided_slice %1 {offsets = [0, 0, 0], sizes = [1, 8, 8], strides = [1, 1, 1]} : vector<3x8x8xf32> to vector<1x8x8xf32>
    %10 = vector.shape_cast %9 : vector<1x8x8xf32> to vector<8x8xf32>
    %cst = arith.constant dense<0.000000e+00> : vector<16x8xf32>
    %11 = tpu.matmul %8, %10, %cst {dimension_numbers = #tpu.dot_dimension_numbers<[1], [0], [0], [1], [0, 0, 1, 1], [], []>} : vector<16x8xf32>, vector<8x8xf32>, vector<16x8xf32> -> vector<16x8xf32>
    %12 = vector.shape_cast %0 : vector<1x16x8xf32> to vector<16x8xf32>
    %13 = vector.extract_strided_slice %1 {offsets = [1, 0, 0], sizes = [1, 8, 8], strides = [1, 1, 1]} : vector<3x8x8xf32> to vector<1x8x8xf32>
    %14 = vector.shape_cast %13 : vector<1x8x8xf32> to vector<8x8xf32>
    %cst_5 = arith.constant dense<0.000000e+00> : vector<16x8xf32>
    %15 = tpu.matmul %12, %14, %cst_5 {dimension_numbers = #tpu.dot_dimension_numbers<[1], [0], [0], [1], [0, 0, 1, 1], [], []>} : vector<16x8xf32>, vector<8x8xf32>, vector<16x8xf32> -> vector<16x8xf32>
    %16 = arith.addf %11, %15 : vector<16x8xf32>
    %17 = vector.shape_cast %7 : vector<1x16x8xf32> to vector<16x8xf32>
    %18 = vector.extract_strided_slice %1 {offsets = [2, 0, 0], sizes = [1, 8, 8], strides = [1, 1, 1]} : vector<3x8x8xf32> to vector<1x8x8xf32>
    %19 = vector.shape_cast %18 : vector<1x8x8xf32> to vector<8x8xf32>
    %cst_6 = arith.constant dense<0.000000e+00> : vector<16x8xf32>
    %20 = tpu.matmul %17, %19, %cst_6 {dimension_numbers = #tpu.dot_dimension_numbers<[1], [0], [0], [1], [0, 0, 1, 1], [], []>} : vector<16x8xf32>, vector<8x8xf32>, vector<16x8xf32> -> vector<16x8xf32>
    %21 = arith.addf %16, %20 : vector<16x8xf32>
    %22 = vector.shape_cast %21 : vector<16x8xf32> to vector<1x16x8xf32>
    %23 = vector.shape_cast %22 : vector<1x16x8xf32> to vector<16x8xf32>
    %cst_7 = arith.constant dense<0.000000e+00> : vector<8xf32>
    %24 = vector.multi_reduction <add>, %23, %cst_7 [0] : vector<16x8xf32> to vector<8xf32>
    %25 = vector.shape_cast %24 : vector<8xf32> to vector<1x8xf32>
    %cst_8 = arith.constant 6.250000e-02 : f32
    %26 = vector.broadcast %cst_8 : f32 to vector<1x8xf32>
    %27 = arith.mulf %25, %26 : vector<1x8xf32>
    %28 = vector.broadcast %27 : vector<1x8xf32> to vector<16x8xf32>
    %29 = arith.subf %23, %28 : vector<16x8xf32>
    %30 = arith.mulf %29, %29 : vector<16x8xf32>
    %cst_9 = arith.constant dense<0.000000e+00> : vector<8xf32>
    %31 = vector.multi_reduction <add>, %30, %cst_9 [0] : vector<16x8xf32> to vector<8xf32>
    %32 = vector.shape_cast %31 : vector<8xf32> to vector<1x8xf32>
    %33 = tpu.concatenate %25, %32 in 0 : vector<1x8xf32>, vector<1x8xf32> -> vector<2x8xf32>
    %c0_10 = arith.constant 0 : index
    %c0_11 = arith.constant 0 : index
    %c0_12 = arith.constant 0 : index
    %34 = vector.load %arg3[%c0_10, %c0_11, %c0_12] : memref<1x2x8xf32, #tpu.memory_space<vmem>>, vector<1x2x8xf32>
    %35 = vector.shape_cast %34 : vector<1x2x8xf32> to vector<2x8xf32>
    %36 = vector.shape_cast %33 : vector<2x8xf32> to vector<1x2x8xf32>
    tpu.vector_store %arg3[%c0_10, %c0_11, %c0_12], %36 {strides = array<i32>} : memref<1x2x8xf32, #tpu.memory_space<vmem>>, vector<1x2x8xf32>,
    return
  }
  func.func @transform_0(%arg0: i32) -> (i32, i32, i32) {
    %c0_i32 = arith.constant 0 : i32
    %c0_i32_0 = arith.constant 0 : i32
    %c0_i32_1 = arith.constant 0 : i32
    return %arg0, %c0_i32, %c0_i32_0 : i32, i32, i32
  }
  func.func @transform_1(%arg0: i32) -> (i32, i32, i32) {
    %c0_i32 = arith.constant 0 : i32
    %c0_i32_0 = arith.constant 0 : i32
    %c0_i32_1 = arith.constant 0 : i32
    %c0_i32_2 = arith.constant 0 : i32
    return %c0_i32, %c0_i32_0, %c0_i32_1 : i32, i32, i32
  }
  func.func @transform_2(%arg0: i32) -> (i32, i32, i32) {
    %c0_i32 = arith.constant 0 : i32
    %c0_i32_0 = arith.constant 0 : i32
    %c0_i32_1 = arith.constant 0 : i32
    return %arg0, %c0_i32, %c0_i32_0 : i32, i32, i32
  }
}

</mosaic_0001>

<llo_original>
// kernel: tpu_custom_call.1
$region0: #{tpu_custom_call.1}
  #allocation0 [shape = 'u32[]', space=smem, size = 0x4, offset = 0x4, fixed_abs, tag = 'smem constant byte address 0x4 - core index']
  #allocation1 [shape = 'u32[144,128]{1,0:T(1,128)}', space=vmem, size = 0x12000, scoped, tag = 'internal scratch']
  %s0 = inlined_call_operand.vmem [shape: f32[2,16,8], index: 0, kind: input, shape index: {}]
  %s1 = inlined_call_operand.vmem [shape: f32[3,8,8], index: 1, kind: input, shape index: {}]
  %s2 = inlined_call_operand.hbm [shape: f32[2,2,8], index: 2, kind: output, shape index: {}]
  %s3 = sld [smem:[#allocation0]]
  $region41: #{tpu_custom_call.1} parent=0
    _
  %s5 = ssub.s32 1, %s3
  %s6 = scalar_select 0, %s5, %s3
  $region1: #{tpu_custom_call.1} parent=0
    #allocation2 [shape = 'u8[2048]{0}', space=vmem, size = 0x800, scoped, tag = 'output window, operand 0']
    #allocation3 [shape = 's32[2]{0}', space=sflag, size = 0x8, scoped, tag = 'scoped memory for tpu_custom_call.1']
    %7 = vsyncpa [#allocation3], 0
    %s8 = scalar_lea.sflag [#allocation3], 1
    %9 = vsyncpa %s8, 0
    loop: start=0, step=1, limit=4
    $region2: #{tpu_custom_call.1} parent=1 // loop_pre_header
      _
    $region3: #{tpu_custom_call.1} parent=1 // loop_header
      %s11 = sphi 0, %s15
      %p12 = scmp.ge.s32.totalorder %s11, 4
      %s21 = sphi 0, %s23
      %s24 = sphi 0, %s21
      %s25 = sphi 0, %s24
      %s41 = sphi 0, %s25
      %s45 = sphi 0, %s45
      %s47 = sphi 0, %s45
      %s48 = sphi 0, %s47
      %s62 = sphi 0, %s48
      %s68 = sphi 0, %s70
      %s71 = sphi 0, %s68
      %s72 = sphi 0, %s71
      %s88 = sphi 0, %s72
    $region4: #{tpu_custom_call.1} parent=1 // loop_header_branch
      %14 = sbr.rel (%p12) target = $region8
    $region5: #{tpu_custom_call.1} parent=1 // loop_body
      %s16 = ssub.s32 %s11, 1
      %s17 = ssub.s32 %s11, 2
      %s18 = sadd.s32 %s11, 1
      %s19 = ssub.s32 %s11, %s18
      %p20 = scmp.eq.s32.totalorder %s19, 0
      %s22 = sadd.s32 %s21, 1
      %s23 = scalar_select %p20, %s21, %s22
      %p26 = pneg %p20
      %p27 = scmp.eq.s32.totalorder %s11, 1
      %p28 = por %p26, %p27
      %p29 = scmp.ne.s32.totalorder %s21, %s24
      %p30 = scmp.eq.s32.totalorder %s11, 0
      %p31 = por %p29, %p30
      %p32 = scmp.ne.s32.totalorder %s21, %s24
      %p33 = scmp.eq.s32.totalorder %s16, 1
      %p34 = por %p32, %p33
      %p35 = scmp.ne.s32.totalorder %s24, %s25
      %p36 = scmp.eq.s32.totalorder %s16, 0
      %p37 = por %p35, %p36
      %p38 = scmp.ne.s32.totalorder %s24, %s25
      %p39 = scmp.eq.s32.totalorder %s17, 1
      %p40 = por %p38, %p39
      %p42 = scmp.ne.s32.totalorder %s25, %s41
      %p43 = scmp.eq.s32.totalorder %s17, 0
      %p44 = por %p42, %p43
      %s46 = sadd.s32 %s45, 1
      %p49 = scmp.eq.s32.totalorder %s11, 1
      %p50 = scmp.ne.s32.totalorder %s45, %s47
      %p51 = scmp.eq.s32.totalorder %s11, 0
      %p52 = por %p50, %p51
      %p53 = scmp.ne.s32.totalorder %s45, %s47
      %p54 = scmp.eq.s32.totalorder %s16, 1
      %p55 = por %p53, %p54
      %p56 = scmp.ne.s32.totalorder %s47, %s48
      %p57 = scmp.eq.s32.totalorder %s16, 0
      %p58 = por %p56, %p57
      %p59 = scmp.ne.s32.totalorder %s47, %s48
      %p60 = scmp.eq.s32.totalorder %s17, 1
      %p61 = por %p59, %p60
      %p63 = scmp.ne.s32.totalorder %s48, %s62
      %p64 = scmp.eq.s32.totalorder %s17, 0
      %p65 = por %p63, %p64
      %s66 = ssub.s32 %s11, %s18
      %p67 = scmp.eq.s32.totalorder %s66, 0
      %s69 = sadd.s32 %s68, 1
      %s70 = scalar_select %p67, %s68, %s69
      %p73 = pneg %p67
      %p74 = scmp.eq.s32.totalorder %s11, 1
      %p75 = por %p73, %p74
      %p76 = scmp.ne.s32.totalorder %s68, %s71
      %p77 = scmp.eq.s32.totalorder %s11, 0
      %p78 = por %p76, %p77
      %p79 = scmp.ne.s32.totalorder %s68, %s71
      %p80 = scmp.eq.s32.totalorder %s16, 1
      %p81 = por %p79, %p80
      %p82 = scmp.ne.s32.totalorder %s71, %s72
      %p83 = scmp.eq.s32.totalorder %s16, 0
      %p84 = por %p82, %p83
      %p85 = scmp.ne.s32.totalorder %s71, %s72
      %p86 = scmp.eq.s32.totalorder %s17, 1
      %p87 = por %p85, %p86
      %p89 = scmp.ne.s32.totalorder %s72, %s88
      %p90 = scmp.eq.s32.totalorder %s17, 0
      %p91 = por %p89, %p90
      %p92 = scmp.le.s32.totalorder 1, %s11
      %p93 = scmp.lt.s32.totalorder %s11, 3
      %p94 = pnand %p92, %p93
      %p95 = pneg %p94
      // Predicated region
      $region9: #{tpu_custom_call.1} parent=5 // pred_check
        _
      $region10: #{tpu_custom_call.1} parent=5 // pred_check_branch
        %97 = sbr.rel (%p94) target = $region12
      $region11: #{tpu_custom_call.1} parent=5 // pred_region
        %s98 = ssub.s32 %s11, 1
        // Predicated region
        $region13: #{tpu_custom_call.1} parent=11 // pred_check
          %p99 = pneg %p58
        $region14: #{tpu_custom_call.1} parent=11 // pred_check_branch
          %101 = sbr.rel (%p99) target = $region16
        $region15: #{tpu_custom_call.1} parent=11 // pred_region
          _
        $region16: #{tpu_custom_call.1} parent=11 // pred_fallthru
          _
      $region12: #{tpu_custom_call.1} parent=5 // pred_fallthru
        _
      %p102 = scmp.lt.s32.totalorder %s11, 2
      // Predicated region
      $region17: #{tpu_custom_call.1} parent=5 // pred_check
        %p103 = pneg %p102
      $region18: #{tpu_custom_call.1} parent=5 // pred_check_branch
        %105 = sbr.rel (%p103) target = $region20
      $region19: #{tpu_custom_call.1} parent=5 // pred_region
        // Predicated region
        $region21: #{tpu_custom_call.1} parent=19 // pred_check
          %p106 = pneg %p31
        $region22: #{tpu_custom_call.1} parent=19 // pred_check_branch
          %108 = sbr.rel (%p106) target = $region24
        $region23: #{tpu_custom_call.1} parent=19 // pred_region
          %p109 = scmp.lt.s32.totalorder %s11, 1
          %s110 = scalar_select %p109, %s11, 1
          %s111 = smul.addr %s110, 2
          %s112 = smul.addr %s111, 8
          %s113 = scalar_lea.vmem %s0, %s112
        $region24: #{tpu_custom_call.1} parent=19 // pred_fallthru
          _
      $region20: #{tpu_custom_call.1} parent=5 // pred_fallthru
        _
      %p114 = scmp.le.s32.totalorder 1, %s11
      %p115 = scmp.lt.s32.totalorder %s11, 3
      %p116 = pnand %p114, %p115
      %p117 = pneg %p116
      // Predicated region
      $region25: #{tpu_custom_call.1} parent=5 // pred_check
        _
      $region26: #{tpu_custom_call.1} parent=5 // pred_check_branch
        %119 = sbr.rel (%p116) target = $region28
      $region27: #{tpu_custom_call.1} parent=5 // pred_region
        %s120 = ssub.s32 %s11, 1
        %p121 = scmp.lt.s32.totalorder %s16, 1
        %s122 = scalar_select %p121, %s16, 1
        %s123 = smul.addr %s122, 2
        %s124 = smul.addr %s123, 8
        %s125 = scalar_lea.vmem %s0, %s124
        %p126 = pneg %p37
        %p127 = pneg %p34
        %p128 = pneg %p58
        %p129 = pneg %p55
        %p130 = pneg %p84
        %p131 = pneg %p81
        %s132 = sand.u32 %s71, 1
        %s133 = scalar_lea.sflag [#allocation3], %s132
        %s134 = sand.u32 %s71, 1
        %s135 = smul.addr %s134, 2
        %s136 = scalar_lea.vmem [#allocation2], %s135
        %p137 = scmp.lt.s32.totalorder %s16, 1
        %s138 = scalar_select %p137, %s16, 1
        %s139 = smul.addr %s138, 2
        %s140 = smul.addr %s139, 8
        %s141 = scalar_lea.vmem %s0, %s140
        %v142 = vld [vmem:[%s141] sm:$0xff]
        %v143 = vld [vmem:[%s141 + $0x8] sm:$0xff]
        %v144 = vld [vmem:[%s1] sm:$0xff]
        %v145 = vld [vmem:[%s1 + $0x8] sm:$0xff]
        %v146 = vld [vmem:[%s1 + $0x10] sm:$0xff]
        %v148 = vrot.slane %v143, 7
        %vm151 = vcmask 1040384
        %v152 = vrot.slane %v142, 7
        %v153 = vsel %vm151, %v152, %v148
        %v155 = vsel %vm151, %v148, %v152
        %vm156 = vcmask 1046528
        %v157 = vrot.slane %v142, 1
        %v158 = vrot.slane %v143, 1
        %v159 = vsel %vm156, %v157, %v158
        %v162 = vsel %vm156, %v158, %v157
        %vm163 = vcmask 64512
        %v164 = vsel %vm163, %v142, 0
        %v166 = vsel %vm163, %v143, 0
        %168 = vmatprep.subr.mxu0 0.0
        %169 = vmatpush1.msra.mxu0 0.0
        %170 = vmatprep.subr.mxu0 0.0
        %171 = vmatpush1.msra.mxu0 0.0
        %172 = vmatprep.subr.mxu0 0.0
        %173 = vmatpush1.msra.mxu0 0.0
        %174 = vmatprep.subr.mxu0 0.0
        %175 = vmatpush1.msra.mxu0 0.0
        %176 = vmatprep.subr.mxu0 0.0
        %177 = vmatpush1.msra.mxu0 0.0
        %178 = vmatprep.subr.mxu0 0.0
        %179 = vmatpush1.msra.mxu0 0.0
        %180 = vmatprep.subr.mxu0 0.0
        %181 = vmatpush1.msra.mxu0 0.0
        %182 = vmatprep.subr.mxu0 0.0
        %183 = vmatpush1.msra.mxu0 0.0
        %184 = vmatprep.subr.mxu0 0.0
        %185 = vmatpush1.msra.mxu0 0.0
        %186 = vmatprep.subr.mxu0 0.0
        %187 = vmatpush1.msra.mxu0 0.0
        %188 = vmatprep.subr.mxu0 0.0
        %189 = vmatpush1.msra.mxu0 0.0
        %190 = vmatprep.subr.mxu0 0.0
        %191 = vmatpush1.msra.mxu0 0.0
        %192 = vmatprep.subr.mxu0 0.0
        %193 = vmatpush1.msra.mxu0 0.0
        %194 = vmatprep.subr.mxu0 0.0
        %195 = vmatpush1.msra.mxu0 0.0
        %196 = vmatprep.subr.mxu0 0.0
        %197 = vmatpush1.msra.mxu0 0.0
        %198 = vmatprep.subr.mxu0 0.0
        %199 = vmatpush1.msra.mxu0 %v145
        %200 = vmatprep.subr.mxu0 0.0
        %201 = vmatpush2.msra.mxu0 0.0
        %202 = vmatprep.subr.mxu0 0.0
        %203 = vmatpush2.msra.mxu0 0.0
        %204 = vmatprep.subr.mxu0 0.0
        %205 = vmatpush2.msra.mxu0 0.0
        %206 = vmatprep.subr.mxu0 0.0
        %207 = vmatpush2.msra.mxu0 0.0
        %208 = vmatprep.subr.mxu0 0.0
        %209 = vmatpush2.msra.mxu0 0.0
        %210 = vmatprep.subr.mxu0 0.0
        %211 = vmatpush2.msra.mxu0 0.0
        %212 = vmatprep.subr.mxu0 0.0
        %213 = vmatpush2.msra.mxu0 0.0
        %214 = vmatprep.subr.mxu0 0.0
        %215 = vmatpush2.msra.mxu0 0.0
        %216 = vmatprep.subr.mxu0 0.0
        %217 = vmatpush2.msra.mxu0 0.0
        %218 = vmatprep.subr.mxu0 0.0
        %219 = vmatpush2.msra.mxu0 0.0
        %220 = vmatprep.subr.mxu0 0.0
        %221 = vmatpush2.msra.mxu0 0.0
        %222 = vmatprep.subr.mxu0 0.0
        %223 = vmatpush2.msra.mxu0 0.0
        %224 = vmatprep.subr.mxu0 0.0
        %225 = vmatpush2.msra.mxu0 0.0
        %226 = vmatprep.subr.mxu0 0.0
        %227 = vmatpush2.msra.mxu0 0.0
        %228 = vmatprep.subr.mxu0 0.0
        %229 = vmatpush2.msra.mxu0 0.0
        %230 = vmatprep.subr.mxu0 0.0
        %231 = vmatpush2.msra.mxu0 0.0
        %232 = vmatprep.mubr.f32.mxu0 0.0
        %233 = vmatmul.mubr.f32.gmra.mxu0 %v164
        %v234 = vpop.f32.mrf.mxu0
        %v235 = vadd.f32 0.0, %v234
        %v236 = vpop.f32.mrf.mxu0
        %237 = vmatprep.mubr.f32.mxu0 0.0
        %238 = vmatmul.mubr.f32.gmra.mxu0 %v166
        %v239 = vpop.f32.mrf.mxu0
        %v240 = vadd.f32 0.0, %v239
        %v241 = vpop.f32.mrf.mxu0
        %242 = vdwg.mxu0
        %v244 = vsel %vm163, %v155, 0
        %v246 = vsel %vm163, %v153, 0
        %248 = vmatprep.subr.mxu0 0.0
        %249 = vmatpush1.msra.mxu0 0.0
        %250 = vmatprep.subr.mxu0 0.0
        %251 = vmatpush1.msra.mxu0 0.0
        %252 = vmatprep.subr.mxu0 0.0
        %253 = vmatpush1.msra.mxu0 0.0
        %254 = vmatprep.subr.mxu0 0.0
        %255 = vmatpush1.msra.mxu0 0.0
        %256 = vmatprep.subr.mxu0 0.0
        %257 = vmatpush1.msra.mxu0 0.0
        %258 = vmatprep.subr.mxu0 0.0
        %259 = vmatpush1.msra.mxu0 0.0
        %260 = vmatprep.subr.mxu0 0.0
        %261 = vmatpush1.msra.mxu0 0.0
        %262 = vmatprep.subr.mxu0 0.0
        %263 = vmatpush1.msra.mxu0 0.0
        %264 = vmatprep.subr.mxu0 0.0
        %265 = vmatpush1.msra.mxu0 0.0
        %266 = vmatprep.subr.mxu0 0.0
        %267 = vmatpush1.msra.mxu0 0.0
        %268 = vmatprep.subr.mxu0 0.0
        %269 = vmatpush1.msra.mxu0 0.0
        %270 = vmatprep.subr.mxu0 0.0
        %271 = vmatpush1.msra.mxu0 0.0
        %272 = vmatprep.subr.mxu0 0.0
        %273 = vmatpush1.msra.mxu0 0.0
        %274 = vmatprep.subr.mxu0 0.0
        %275 = vmatpush1.msra.mxu0 0.0
        %276 = vmatprep.subr.mxu0 0.0
        %277 = vmatpush1.msra.mxu0 0.0
        %278 = vmatprep.subr.mxu0 0.0
        %279 = vmatpush1.msra.mxu0 %v144
        %280 = vmatprep.subr.mxu0 0.0
        %281 = vmatpush2.msra.mxu0 0.0
        %282 = vmatprep.subr.mxu0 0.0
        %283 = vmatpush2.msra.mxu0 0.0
        %284 = vmatprep.subr.mxu0 0.0
        %285 = vmatpush2.msra.mxu0 0.0
        %286 = vmatprep.subr.mxu0 0.0
        %287 = vmatpush2.msra.mxu0 0.0
        %288 = vmatprep.subr.mxu0 0.0
        %289 = vmatpush2.msra.mxu0 0.0
        %290 = vmatprep.subr.mxu0 0.0
        %291 = vmatpush2.msra.mxu0 0.0
        %292 = vmatprep.subr.mxu0 0.0
        %293 = vmatpush2.msra.mxu0 0.0
        %294 = vmatprep.subr.mxu0 0.0
        %295 = vmatpush2.msra.mxu0 0.0
        %296 = vmatprep.subr.mxu0 0.0
        %297 = vmatpush2.msra.mxu0 0.0
        %298 = vmatprep.subr.mxu0 0.0
        %299 = vmatpush2.msra.mxu0 0.0
        %300 = vmatprep.subr.mxu0 0.0
        %301 = vmatpush2.msra.mxu0 0.0
        %302 = vmatprep.subr.mxu0 0.0
        %303 = vmatpush2.msra.mxu0 0.0
        %304 = vmatprep.subr.mxu0 0.0
        %305 = vmatpush2.msra.mxu0 0.0
        %306 = vmatprep.subr.mxu0 0.0
        %307 = vmatpush2.msra.mxu0 0.0
        %308 = vmatprep.subr.mxu0 0.0
        %309 = vmatpush2.msra.mxu0 0.0
        %310 = vmatprep.subr.mxu0 0.0
        %311 = vmatpush2.msra.mxu0 0.0
        %312 = vmatprep.mubr.f32.mxu0 0.0
        %313 = vmatmul.mubr.f32.gmra.mxu0 %v244
        %v314 = vpop.f32.mrf.mxu0
        %v315 = vadd.f32 %v235, %v314
        %v316 = vpop.f32.mrf.mxu0
        %317 = vmatprep.mubr.f32.mxu0 0.0
        %318 = vmatmul.mubr.f32.gmra.mxu0 %v246
        %v319 = vpop.f32.mrf.mxu0
        %v320 = vadd.f32 %v240, %v319
        %v321 = vpop.f32.mrf.mxu0
        %322 = vdwg.mxu0
        %v323 = vsel %vm163, %v159, 0
        %v326 = vsel %vm163, %v162, 0
        %328 = vmatprep.subr.mxu0 0.0
        %329 = vmatpush1.msra.mxu0 0.0
        %330 = vmatprep.subr.mxu0 0.0
        %331 = vmatpush1.msra.mxu0 0.0
        %332 = vmatprep.subr.mxu0 0.0
        %333 = vmatpush1.msra.mxu0 0.0
        %334 = vmatprep.subr.mxu0 0.0
        %335 = vmatpush1.msra.mxu0 0.0
        %336 = vmatprep.subr.mxu0 0.0
        %337 = vmatpush1.msra.mxu0 0.0
        %338 = vmatprep.subr.mxu0 0.0
        %339 = vmatpush1.msra.mxu0 0.0
        %340 = vmatprep.subr.mxu0 0.0
        %341 = vmatpush1.msra.mxu0 0.0
        %342 = vmatprep.subr.mxu0 0.0
        %343 = vmatpush1.msra.mxu0 0.0
        %344 = vmatprep.subr.mxu0 0.0
        %345 = vmatpush1.msra.mxu0 0.0
        %346 = vmatprep.subr.mxu0 0.0
        %347 = vmatpush1.msra.mxu0 0.0
        %348 = vmatprep.subr.mxu0 0.0
        %349 = vmatpush1.msra.mxu0 0.0
        %350 = vmatprep.subr.mxu0 0.0
        %351 = vmatpush1.msra.mxu0 0.0
        %352 = vmatprep.subr.mxu0 0.0
        %353 = vmatpush1.msra.mxu0 0.0
        %354 = vmatprep.subr.mxu0 0.0
        %355 = vmatpush1.msra.mxu0 0.0
        %356 = vmatprep.subr.mxu0 0.0
        %357 = vmatpush1.msra.mxu0 0.0
        %358 = vmatprep.subr.mxu0 0.0
        %359 = vmatpush1.msra.mxu0 %v146
        %360 = vmatprep.subr.mxu0 0.0
        %361 = vmatpush2.msra.mxu0 0.0
        %362 = vmatprep.subr.mxu0 0.0
        %363 = vmatpush2.msra.mxu0 0.0
        %364 = vmatprep.subr.mxu0 0.0
        %365 = vmatpush2.msra.mxu0 0.0
        %366 = vmatprep.subr.mxu0 0.0
        %367 = vmatpush2.msra.mxu0 0.0
        %368 = vmatprep.subr.mxu0 0.0
        %369 = vmatpush2.msra.mxu0 0.0
        %370 = vmatprep.subr.mxu0 0.0
        %371 = vmatpush2.msra.mxu0 0.0
        %372 = vmatprep.subr.mxu0 0.0
        %373 = vmatpush2.msra.mxu0 0.0
        %374 = vmatprep.subr.mxu0 0.0
        %375 = vmatpush2.msra.mxu0 0.0
        %376 = vmatprep.subr.mxu0 0.0
        %377 = vmatpush2.msra.mxu0 0.0
        %378 = vmatprep.subr.mxu0 0.0
        %379 = vmatpush2.msra.mxu0 0.0
        %380 = vmatprep.subr.mxu0 0.0
        %381 = vmatpush2.msra.mxu0 0.0
        %382 = vmatprep.subr.mxu0 0.0
        %383 = vmatpush2.msra.mxu0 0.0
        %384 = vmatprep.subr.mxu0 0.0
        %385 = vmatpush2.msra.mxu0 0.0
        %386 = vmatprep.subr.mxu0 0.0
        %387 = vmatpush2.msra.mxu0 0.0
        %388 = vmatprep.subr.mxu0 0.0
        %389 = vmatpush2.msra.mxu0 0.0
        %390 = vmatprep.subr.mxu0 0.0
        %391 = vmatpush2.msra.mxu0 0.0
        %392 = vmatprep.mubr.f32.mxu0 0.0
        %393 = vmatmul.mubr.f32.gmra.mxu0 %v323
        %v394 = vpop.f32.mrf.mxu0
        %v395 = vadd.f32 0.0, %v394
        %v396 = vpop.f32.mrf.mxu0
        %397 = vmatprep.mubr.f32.mxu0 0.0
        %398 = vmatmul.mubr.f32.gmra.mxu0 %v326
        %v399 = vpop.f32.mrf.mxu0
        %v400 = vadd.f32 0.0, %v399
        %v401 = vpop.f32.mrf.mxu0
        %402 = vdwg.mxu0
        %v403 = vadd.f32 %v315, %v395
        %v404 = vadd.f32 %v320, %v400
        %v405 = vsel %vm163, %v403, 0.0
        %v406 = vsel %vm163, %v404, 0.0
        %v407 = vadd.f32 %v405, %v406
        %v408 = vrot.slane %v407, 4
        %v409 = vadd.f32 %v407, %v408
        %v410 = vrot.slane %v409, 2
        %v411 = vadd.f32 %v409, %v410
        %v412 = vrot.slane %v411, 1
        %v413 = vadd.f32 %v411, %v412
        %v414 = vmul.f32 %v413, 0.0625
        %v415 = vsub.f32 %v403, %v414
        %v416 = vsub.f32 %v404, %v414
        %v417 = vmul.f32 %v415, %v415
        %v418 = vmul.f32 %v416, %v416
        %v419 = vsel %vm163, %v417, 0.0
        %v420 = vsel %vm163, %v418, 0.0
        %v421 = vadd.f32 %v419, %v420
        %v422 = vrot.slane %v421, 4
        %v423 = vadd.f32 %v421, %v422
        %v424 = vrot.slane %v423, 2
        %v425 = vadd.f32 %v423, %v424
        %v426 = vrot.slane %v425, 1
        %v427 = vadd.f32 %v425, %v426
        %v428 = vsel %vm151, %v413, %v427
        %vm429 = vcmask 58368
        %430 = vst.msk [vmem:[%s136] sm:$0x3] %vm429, %v428
        %s431 = sand.u32 %s71, 1
        %s432 = scalar_lea.sflag [#allocation3], %s431
        %s433 = sand.u32 %s71, 1
        %s434 = smul.addr %s433, 2
        %s435 = scalar_lea.vmem [#allocation2], %s434
        // Predicated region
        $region29: #{tpu_custom_call.1} parent=27 // pred_check
          %p436 = pneg %p81
        $region30: #{tpu_custom_call.1} parent=27 // pred_check_branch
          %438 = sbr.rel (%p436) target = $region32
        $region31: #{tpu_custom_call.1} parent=27 // pred_region
          %s440 = ssub.s32 32, 32
          %441 = vsyncadd %s432, %s440
          %s442 = smul.addr %s16, 32
          %s443 = scalar_lea.hbm %s2, %s442
          %s445 = sshll.u32 %s435, 4
          %s446 = int_to_ptr.vmem [resolvable:$true] %s445
          %448 = dma.vmem_to_hbm [thread:$0]  %s446, 32, %s443, %s432
        $region32: #{tpu_custom_call.1} parent=27 // pred_fallthru
          _
      $region28: #{tpu_custom_call.1} parent=5 // pred_fallthru
        _
      %p449 = scmp.le.s32.totalorder 2, %s11
      // Predicated region
      $region33: #{tpu_custom_call.1} parent=5 // pred_check
        %p450 = pneg %p449
      $region34: #{tpu_custom_call.1} parent=5 // pred_check_branch
        %452 = sbr.rel (%p450) target = $region36
      $region35: #{tpu_custom_call.1} parent=5 // pred_region
        %s453 = ssub.s32 %s11, 2
        // Predicated region
        $region37: #{tpu_custom_call.1} parent=35 // pred_check
          %p454 = pneg %p87
        $region38: #{tpu_custom_call.1} parent=35 // pred_check_branch
          %456 = sbr.rel (%p454) target = $region40
        $region39: #{tpu_custom_call.1} parent=35 // pred_region
          %s457 = sand.u32 %s72, 1
          %s458 = scalar_lea.sflag [#allocation3], %s457
          %s459 = sand.u32 %s72, 1
          %s460 = smul.addr %s459, 2
          %s461 = scalar_lea.vmem [#allocation2], %s460
          %462 = dma.done %s458, 32
        $region40: #{tpu_custom_call.1} parent=35 // pred_fallthru
          _
      $region36: #{tpu_custom_call.1} parent=5 // pred_fallthru
        _
    $region6: #{tpu_custom_call.1} parent=1 // loop_footer
      %s15 = sadd.s32 1, %s11
    $region7: #{tpu_custom_call.1} parent=1 // loop_footer_branch
      %10 = sbr.rel target = $region3
    $region8: #{tpu_custom_call.1} parent=1 // loop_exit
      _
    %463 = vsyncpa [#allocation3], 1
    %s464 = scalar_lea.sflag [#allocation3], 1
    %465 = vsyncpa %s464, 1

</llo_original>
